<compile_context>
chip_gen: v6e
topology: v6e:2x2x1
jax: 0.10.0
libtpu: 0.0.40
codegen_flags: <defaults>
</compile_context>

<pallas_src>
import functools

import jax
import jax.numpy as jnp
from jax.experimental import pallas as pl
from jax.experimental.pallas import tpu as pltpu


def _round_up(a: int, b: int) -> int:
    return (a + b - 1) // b * b


def _cdiv(a: int, b: int) -> int:
    return (a + b - 1) // b


def _proj_logits_lse_kernel(x_ref, w_ref, b_ref, logits_ref, lse_ref,
                            m_sc, l_sc, *, vocab, tv):
    # x_ref:      (tm, d_model)  weight dtype, resident across vocab axis
    # w_ref:      (d_model, tv)  weight dtype, streamed per vocab tile
    # b_ref:      (1, tv)        f32, streamed per vocab tile
    # logits_ref: (tm, tv)       f32 raw-logits tile (written every step)
    # lse_ref:    (tm, 1)        f32 log-sum-exp (written at the last step)
    # m_sc/l_sc:  (tm, 1)        f32 scratch (running max / running sum)
    j = pl.program_id(1)

    @pl.when(j == 0)
    def _():
        m_sc[...] = jnp.full_like(m_sc, -jnp.inf)
        l_sc[...] = jnp.zeros_like(l_sc)

    logits = jnp.dot(x_ref[...], w_ref[...],
                     preferred_element_type=jnp.float32)
    logits = logits + b_ref[...].astype(jnp.float32)

    # Mask the ragged tail of the last vocab tile (columns >= vocab read
    # garbage from the partial W/bias blocks).  -1e30 contributes nothing to
    # the LSE and the masked columns are sliced off after the kernel.
    if vocab % tv != 0:
        col = jax.lax.broadcasted_iota(jnp.int32, logits.shape, 1) + j * tv
        logits = jnp.where(col < vocab, logits, -1e30)

    # Raw (unnormalized) logits out — normalization is deferred.
    logits_ref[...] = logits

    # Online log-sum-exp across vocab tiles.
    m_prev = m_sc[...]
    m_new = jnp.maximum(m_prev, jnp.max(logits, axis=-1, keepdims=True))
    l_sc[...] = (l_sc[...] * jnp.exp(m_prev - m_new)
                 + jnp.sum(jnp.exp(logits - m_new), axis=-1, keepdims=True))
    m_sc[...] = m_new

    @pl.when(j == pl.num_programs(1) - 1)
    def _():
        lse_ref[...] = m_sc[...] + jnp.log(l_sc[...])


@functools.partial(jax.jit, static_argnames=("tm", "tv", "out_dtype"))
def projection_layer(x, w, b, *, tm=256, tv=512, out_dtype=None):
    """log_softmax(x @ w + b, axis=-1).

    x: [B, S, d_model]; w: [d_model, vocab]; b: [vocab] -> [B, S, vocab].

    The matmul runs at `w.dtype` (x is cast to it — cheap).  For the perf
    path pass bf16 weights/activations; W is never copied/padded here.
    """
    B, S, d_model = x.shape
    vocab = w.shape[1]
    M = B * S
    out_dtype = x.dtype if out_dtype is None else out_dtype

    # ---- Row tiling (multiple of 16 for bf16 sublane packing). ----
    tm_eff = _round_up(min(tm, _round_up(M, 16)), 16)
    # v7x has 2 TensorCores: keep >= 2 row blocks when M is big enough so the
    # "parallel" row axis can shard across them.
    if M > 256 and _cdiv(M, tm_eff) < 2:
        tm_eff = _round_up(_cdiv(M, 2), 16)
    M_pad = _round_up(M, tm_eff)

    # ---- Vocab tiling: tight padding to the 128-lane width only. ----
    assert tv % 128 == 0, "tv must be a multiple of 128"
    vocab_pad = _round_up(vocab, 128)
    tv_eff = min(tv, vocab_pad)
    nv = _cdiv(vocab_pad, tv_eff)

    # ---- Cheap input prep (no full-size W copies). ----
    x2d = x.reshape(M, d_model)
    if x2d.dtype != w.dtype:
        x2d = x2d.astype(w.dtype)
    if M_pad != M:
        x2d = jnp.pad(x2d, ((0, M_pad - M), (0, 0)))
    b2d = b.astype(jnp.float32).reshape(1, vocab)

    # ---- VMEM budget: double-buffered tiles + tiny scratch, capped below the
    # physical per-core VMEM of this generation. ----
    try:
        vmem_cap = int(pltpu.get_tpu_info().vmem_capacity_bytes)
    except Exception:
        vmem_cap = 64 << 20  # conservative (v7x per-TC)
    in_size = jnp.dtype(w.dtype).itemsize
    tile_bytes = (tm_eff * d_model * in_size          # x tile
                  + d_model * tv_eff * in_size        # W tile
                  + max(tv_eff, 128) * 4              # bias tile
                  + tm_eff * tv_eff * 4               # raw-logits out tile
                  + tm_eff * 128 * 4)                 # lse out tile (lane pad)
    scratch_bytes = 2 * tm_eff * 128 * 4
    vmem_limit = int(1.25 * (2 * tile_bytes + scratch_bytes)) + (2 << 20)
    vmem_limit = max(vmem_limit, 32 << 20)
    vmem_limit = min(vmem_limit, max(vmem_cap - (8 << 20), 16 << 20))

    grid = (M_pad // tm_eff, nv)

    logits, lse = pl.pallas_call(
        functools.partial(_proj_logits_lse_kernel, vocab=vocab, tv=tv_eff),
        out_shape=(
            jax.ShapeDtypeStruct((M_pad, vocab_pad), jnp.float32),  # raw logits
            jax.ShapeDtypeStruct((M_pad, 1), jnp.float32),          # LSE
        ),
        grid_spec=pltpu.PrefetchScalarGridSpec(
            num_scalar_prefetch=0,
            grid=grid,
            in_specs=[
                # x rows: resident across the vocab axis.
                pl.BlockSpec((tm_eff, d_model), lambda i, j: (i, 0)),
                # W: streamed vocab-tile by vocab-tile (no wrapper copy).
                pl.BlockSpec((d_model, tv_eff), lambda i, j: (0, j)),
                # Bias tile.
                pl.BlockSpec((1, tv_eff), lambda i, j: (0, j)),
            ],
            out_specs=[
                # Raw logits: tiled along the vocab axis (written every step).
                pl.BlockSpec((tm_eff, tv_eff), lambda i, j: (i, j)),
                # LSE column: resident across the vocab axis, final write only.
                pl.BlockSpec((tm_eff, 1), lambda i, j: (i, 0)),
            ],
            scratch_shapes=[
                pltpu.VMEM((tm_eff, 1), jnp.float32),   # running max
                pltpu.VMEM((tm_eff, 1), jnp.float32),   # running sum
            ],
        ),
        compiler_params=pltpu.CompilerParams(
            dimension_semantics=("parallel", "arbitrary"),
            vmem_limit_bytes=vmem_limit,
        ),
    )(x2d, w, b2d)

    # Deferred normalization: slice + subtract + cast fuse into one XLA
    # elementwise pass over the output.
    logprobs = (logits[:M, :vocab] - lse[:M]).astype(out_dtype)
    return logprobs.reshape(B, S, vocab)


def _reference(x, w, b):
    logits = jnp.einsum("bsd,dv->bsv", x.astype(jnp.float32),
                        w.astype(jnp.float32)) + b
    return jax.nn.log_softmax(logits, axis=-1)


if __name__ == "__main__":
    # Small shapes; vocab=320 is deliberately not a multiple of the vocab tile
    # so the ragged-tail masking + multi-tile online-LSE path is exercised.
    batch, seq, d_model, vocab = 2, 8, 64, 320

    key = jax.random.PRNGKey(0)
    kx, kw, kb = jax.random.split(key, 3)

    x = jax.random.normal(kx, (batch, seq, d_model), dtype=jnp.float32)
    w = jax.random.normal(kw, (d_model, vocab), dtype=jnp.float32) / (d_model ** 0.5)
    b = jax.random.normal(kb, (vocab,), dtype=jnp.float32) * 0.01

    # Full-precision run (3 vocab tiles of 128, last one ragged).
    out = projection_layer(x, w, b, tv=128)
    out = jax.block_until_ready(out)
    ref = _reference(x, w, b)
    assert out.shape == (batch, seq, vocab)
    assert jnp.allclose(out, ref, atol=1e-4, rtol=1e-4), "f32 mismatch vs reference"

    # bf16 perf path: bf16 weights/activations on the MXU, bf16 log-probs out,
    # checked against a reference built from the same bf16-rounded inputs.
    out_bf16 = projection_layer(x.astype(jnp.bfloat16), w.astype(jnp.bfloat16),
                                b, tv=128, out_dtype=jnp.bfloat16)
    out_bf16 = jax.block_until_ready(out_bf16)
    ref_bf16 = _reference(x.astype(jnp.bfloat16), w.astype(jnp.bfloat16), b)
    assert jnp.allclose(out_bf16.astype(jnp.float32), ref_bf16,
                        atol=5e-2, rtol=5e-2), "bf16 mismatch vs reference"

    print("KERNEL_OK")
</pallas_src>

<mosaic_0001>
module attributes {stable_mosaic.version = 11 : i64} {
  func.func @_proj_logits_lse_kernel(%arg0: i32, %arg1: i32, %arg2: memref<16x64xf32, #tpu.memory_space<vmem>>, %arg3: memref<64x128xf32, #tpu.memory_space<vmem>>, %arg4: memref<1x128xf32, #tpu.memory_space<vmem>>, %arg5: memref<16x128xf32, #tpu.memory_space<vmem>>, %arg6: memref<16x1xf32, #tpu.memory_space<vmem>>, %arg7: memref<16x1xf32, #tpu.memory_space<vmem>>, %arg8: memref<16x1xf32, #tpu.memory_space<vmem>>) attributes {dimension_semantics = [#tpu.dimension_semantics<parallel>, #tpu.dimension_semantics<arbitrary>], iteration_bounds = array<i64: 1, 3>, scalar_prefetch = 0 : i64, scratch_operands = 2 : i64, tpu.core_type = #tpu.core_type<tc>, window_params = [{transform_indices = @transform_0, window_bounds = array<i64: 16, 64>}, {transform_indices = @transform_1, window_bounds = array<i64: 64, 128>}, {transform_indices = @transform_2, window_bounds = array<i64: 1, 128>}, {transform_indices = @transform_3, window_bounds = array<i64: 16, 128>}, {transform_indices = @transform_4, window_bounds = array<i64: 16, 1>}]} {
    %c0_i32 = arith.constant 0 : i32
    %0 = arith.cmpi eq, %arg1, %c0_i32 : i32
    %1 = arith.extui %0 : i1 to i32
    %c0_i32_0 = arith.constant 0 : i32
    %2 = arith.cmpi ne, %1, %c0_i32_0 : i32
    scf.if %2 {
      %cst_20 = arith.constant 0xFF800000 : f32
      %37 = vector.broadcast %cst_20 : f32 to vector<16x1xf32>
      %c0_21 = arith.constant 0 : index
      %c0_22 = arith.constant 0 : index
      %38 = vector.load %arg7[%c0_21, %c0_22] : memref<16x1xf32, #tpu.memory_space<vmem>>, vector<16x1xf32>
      tpu.vector_store %arg7[%c0_21, %c0_22], %37 {strides = array<i32>} : memref<16x1xf32, #tpu.memory_space<vmem>>, vector<16x1xf32>,
      %cst_23 = arith.constant 0.000000e+00 : f32
      %39 = vector.broadcast %cst_23 : f32 to vector<16x1xf32>
      %c0_24 = arith.constant 0 : index
      %c0_25 = arith.constant 0 : index
      %40 = vector.load %arg8[%c0_24, %c0_25] : memref<16x1xf32, #tpu.memory_space<vmem>>, vector<16x1xf32>
      tpu.vector_store %arg8[%c0_24, %c0_25], %39 {strides = array<i32>} : memref<16x1xf32, #tpu.memory_space<vmem>>, vector<16x1xf32>,
    } else {
    }
    %c0 = arith.constant 0 : index
    %c0_1 = arith.constant 0 : index
    %3 = vector.load %arg2[%c0, %c0_1] : memref<16x64xf32, #tpu.memory_space<vmem>>, vector<16x64xf32>
    %c0_2 = arith.constant 0 : index
    %c0_3 = arith.constant 0 : index
    %4 = vector.load %arg3[%c0_2, %c0_3] : memref<64x128xf32, #tpu.memory_space<vmem>>, vector<64x128xf32>
    %cst = arith.constant dense<0.000000e+00> : vector<16x128xf32>
    %5 = tpu.matmul %3, %4, %cst {dimension_numbers = #tpu.dot_dimension_numbers<[1], [0], [0], [1], [0, 0, 1, 1], [], []>} : vector<16x64xf32>, vector<64x128xf32>, vector<16x128xf32> -> vector<16x128xf32>
    %c0_4 = arith.constant 0 : index
    %c0_5 = arith.constant 0 : index
    %6 = vector.load %arg4[%c0_4, %c0_5] : memref<1x128xf32, #tpu.memory_space<vmem>>, vector<1x128xf32>
    %7 = vector.broadcast %6 : vector<1x128xf32> to vector<16x128xf32>
    %8 = arith.addf %5, %7 : vector<16x128xf32>
    %9 = tpu.iota {dimensions = array<i32: 1>} : vector<16x128xi32>
    %c128_i32 = arith.constant 128 : i32
    %10 = arith.muli %arg1, %c128_i32 : i32
    %11 = vector.broadcast %10 : i32 to vector<16x128xi32>
    %12 = arith.addi %9, %11 : vector<16x128xi32>
    %c320_i32 = arith.constant 320 : i32
    %13 = vector.broadcast %c320_i32 : i32 to vector<16x128xi32>
    %14 = arith.cmpi slt, %12, %13 : vector<16x128xi32>
    %cst_6 = arith.constant -1.000000e+30 : f32
    %15 = vector.broadcast %cst_6 : f32 to vector<16x128xf32>
    %16 = arith.select %14, %8, %15 : vector<16x128xi1>, vector<16x128xf32>
    %c0_7 = arith.constant 0 : index
    %c0_8 = arith.constant 0 : index
    %17 = vector.load %arg5[%c0_7, %c0_8] : memref<16x128xf32, #tpu.memory_space<vmem>>, vector<16x128xf32>
    tpu.vector_store %arg5[%c0_7, %c0_8], %16 {strides = array<i32>} : memref<16x128xf32, #tpu.memory_space<vmem>>, vector<16x128xf32>,
    %c0_9 = arith.constant 0 : index
    %c0_10 = arith.constant 0 : index
    %18 = vector.load %arg7[%c0_9, %c0_10] : memref<16x1xf32, #tpu.memory_space<vmem>>, vector<16x1xf32>
    %cst_11 = arith.constant dense<0xFF800000> : vector<16xf32>
    %19 = vector.multi_reduction <maximumf>, %16, %cst_11 [1] : vector<16x128xf32> to vector<16xf32>
    %20 = vector.shape_cast %19 : vector<16xf32> to vector<16x1xf32>
    %21 = arith.maximumf %18, %20 : vector<16x1xf32>
    %c0_12 = arith.constant 0 : index
    %c0_13 = arith.constant 0 : index
    %22 = vector.load %arg8[%c0_12, %c0_13] : memref<16x1xf32, #tpu.memory_space<vmem>>, vector<16x1xf32>
    %23 = arith.subf %18, %21 : vector<16x1xf32>
    %24 = math.exp %23 : vector<16x1xf32>
    %25 = arith.mulf %22, %24 : vector<16x1xf32>
    %26 = vector.broadcast %21 : vector<16x1xf32> to vector<16x128xf32>
    %27 = arith.subf %16, %26 : vector<16x128xf32>
    %28 = math.exp %27 : vector<16x128xf32>
    %cst_14 = arith.constant dense<0.000000e+00> : vector<16xf32>
    %29 = vector.multi_reduction <add>, %28, %cst_14 [1] : vector<16x128xf32> to vector<16xf32>
    %30 = vector.shape_cast %29 : vector<16xf32> to vector<16x1xf32>
    %31 = arith.addf %25, %30 : vector<16x1xf32>
    %c0_15 = arith.constant 0 : index
    %c0_16 = arith.constant 0 : index
    %32 = vector.load %arg8[%c0_15, %c0_16] : memref<16x1xf32, #tpu.memory_space<vmem>>, vector<16x1xf32>
    tpu.vector_store %arg8[%c0_15, %c0_16], %31 {strides = array<i32>} : memref<16x1xf32, #tpu.memory_space<vmem>>, vector<16x1xf32>,
    %c0_17 = arith.constant 0 : index
    %c0_18 = arith.constant 0 : index
    %33 = vector.load %arg7[%c0_17, %c0_18] : memref<16x1xf32, #tpu.memory_space<vmem>>, vector<16x1xf32>
    tpu.vector_store %arg7[%c0_17, %c0_18], %21 {strides = array<i32>} : memref<16x1xf32, #tpu.memory_space<vmem>>, vector<16x1xf32>,
    %c2_i32 = arith.constant 2 : i32
    %34 = arith.cmpi eq, %arg1, %c2_i32 : i32
    %35 = arith.extui %34 : i1 to i32
    %c0_i32_19 = arith.constant 0 : i32
    %36 = arith.cmpi ne, %35, %c0_i32_19 : i32
    scf.if %36 {
      %c0_20 = arith.constant 0 : index
      %c0_21 = arith.constant 0 : index
      %37 = vector.load %arg7[%c0_20, %c0_21] : memref<16x1xf32, #tpu.memory_space<vmem>>, vector<16x1xf32>
      %c0_22 = arith.constant 0 : index
      %c0_23 = arith.constant 0 : index
      %38 = vector.load %arg8[%c0_22, %c0_23] : memref<16x1xf32, #tpu.memory_space<vmem>>, vector<16x1xf32>
      %39 = math.log %38 : vector<16x1xf32>
      %40 = arith.addf %37, %39 : vector<16x1xf32>
      %c0_24 = arith.constant 0 : index
      %c0_25 = arith.constant 0 : index
      %41 = vector.load %arg6[%c0_24, %c0_25] : memref<16x1xf32, #tpu.memory_space<vmem>>, vector<16x1xf32>
      tpu.vector_store %arg6[%c0_24, %c0_25], %40 {strides = array<i32>} : memref<16x1xf32, #tpu.memory_space<vmem>>, vector<16x1xf32>,
    } else {
    }
    return
  }
  func.func @transform_0(%arg0: i32, %arg1: i32) -> (i32, i32) {
    %c0_i32 = arith.constant 0 : i32
    %c0_i32_0 = arith.constant 0 : i32
    return %arg0, %c0_i32 : i32, i32
  }
  func.func @transform_1(%arg0: i32, %arg1: i32) -> (i32, i32) {
    %c0_i32 = arith.constant 0 : i32
    %c0_i32_0 = arith.constant 0 : i32
    return %c0_i32, %arg1 : i32, i32
  }
  func.func @transform_2(%arg0: i32, %arg1: i32) -> (i32, i32) {
    %c0_i32 = arith.constant 0 : i32
    %c0_i32_0 = arith.constant 0 : i32
    return %c0_i32, %arg1 : i32, i32
  }
  func.func @transform_3(%arg0: i32, %arg1: i32) -> (i32, i32) {
    %c0_i32 = arith.constant 0 : i32
    return %arg0, %arg1 : i32, i32
  }
  func.func @transform_4(%arg0: i32, %arg1: i32) -> (i32, i32) {
    %c0_i32 = arith.constant 0 : i32
    %c0_i32_0 = arith.constant 0 : i32
    return %arg0, %c0_i32 : i32, i32
  }
}

</mosaic_0001>

<llo_original>
// kernel: projection_layer.1
$region0: #{projection_layer.1}
  #allocation0 [shape = 'u32[]', space=smem, size = 0x4, offset = 0x4, fixed_abs, tag = 'smem constant byte address 0x4 - core index']
  #allocation1 [shape = 'u32[144,128]{1,0:T(1,128)}', space=vmem, size = 0x12000, scoped, tag = 'internal scratch']
  #allocation2 [shape = 'f32[16,1]{1,0:T(8,128)}', space=vmem, size = 0x2000, scoped, tag = 'scratch operand']
  #allocation3 [shape = 'f32[16,1]{1,0:T(8,128)}', space=vmem, size = 0x2000, scoped, tag = 'scratch operand']
  %s0 = inlined_call_operand.hbm [shape: f32[16,64], index: 0, kind: input, shape index: {}]
  %s1 = inlined_call_operand.hbm [shape: f32[64,320], index: 1, kind: input, shape index: {}]
  %s2 = inlined_call_operand.vmem [shape: f32[1,320], index: 2, kind: input, shape index: {}]
  %s3 = inlined_call_operand.vmem [shape: f32[16,384], index: 3, kind: output, shape index: {0}]
  %s4 = inlined_call_operand.vmem [shape: f32[16,1], index: 4, kind: output, shape index: {1}]
  %5 = xla_tuple %s3, %s4
  %s6 = sld [smem:[#allocation0]]
  $region103: #{projection_layer.1} parent=0
    _
  %s8 = ssub.s32 1, %s6
  %s9 = scalar_select 0, %s8, %s6
  $region1: #{projection_layer.1} parent=0
    #allocation4 [shape = 'u8[8192]{0}', space=vmem, size = 0x2000, scoped, tag = 'input window, operand 0, single buffered']
    #allocation5 [shape = 's32[2]{0}', space=sflag, size = 0x8, scoped, tag = 'scoped memory for projection_layer.1']
    #allocation6 [shape = 'u8[65536]{0}', space=vmem, size = 0x10000, scoped, tag = 'input window, operand 1']
    #allocation7 [shape = 's32[2]{0}', space=sflag, size = 0x8, scoped, tag = 'scoped memory for projection_layer.1']
    #allocation8 [shape = 'u8[16384]{0}', space=vmem, size = 0x4000, scoped, tag = 'output window, operand 0']
    %10 = vsyncpa [#allocation5], 0
    %11 = vsyncpa [#allocation7], 0
    %s12 = scalar_lea.sflag [#allocation7], 1
    %13 = vsyncpa %s12, 0
    loop: start=0, step=1, limit=5
    $region2: #{projection_layer.1} parent=1 // loop_pre_header
      _
    $region3: #{projection_layer.1} parent=1 // loop_header
      %s15 = sphi 0, %s19
      %p16 = scmp.ge.s32.totalorder %s15, 5
      %s22 = sphi 0, %s34
      %s23 = sphi 0, %s30
      %s24 = sphi 0, %s22
      %s25 = sphi 0, %s23
      %s26 = sphi 0, %s24
      %s27 = sphi 0, %s25
      %s37 = sphi 0, %s39
      %s40 = sphi 0, %s37
      %s41 = sphi 0, %s40
      %s57 = sphi 0, %s41
      %s63 = sphi 0, %s65
      %s66 = sphi 0, %s63
      %s67 = sphi 0, %s66
      %s83 = sphi 0, %s67
      %s89 = sphi 0, %s91
      %s92 = sphi 0, %s89
      %s93 = sphi 0, %s92
      %s109 = sphi 0, %s93
      %s117 = sphi 0, %s119
      %s120 = sphi 0, %s117
      %s121 = sphi 0, %s120
      %s137 = sphi 0, %s121
      %s143 = sphi 0, %s145
      %s146 = sphi 0, %s143
      %s147 = sphi 0, %s146
      %s163 = sphi 0, %s147
    $region4: #{projection_layer.1} parent=1 // loop_header_branch
      %18 = sbr.rel (%p16) target = $region8
    $region5: #{projection_layer.1} parent=1 // loop_body
      %s20 = ssub.s32 %s15, 1
      %s21 = ssub.s32 %s15, 2
      %s28 = sadd.s32 1, %s23
      %p29 = scmp.ge.s32.totalorder %s28, 3
      %s30 = scalar_select %p29, 0, %s28
      %s31 = sadd.s32 1, %s22
      %s32 = scalar_select %p29, %s31, %s22
      %p33 = scmp.ge.s32.totalorder %s32, 1
      %s34 = scalar_select %p33, 0, %s32
      %s35 = ssub.s32 %s22, %s34
      %p36 = scmp.eq.s32.totalorder %s35, 0
      %s38 = sadd.s32 %s37, 1
      %s39 = scalar_select %p36, %s37, %s38
      %p42 = pneg %p36
      %p43 = scmp.eq.s32.totalorder %s15, 2
      %p44 = por %p42, %p43
      %p45 = scmp.ne.s32.totalorder %s37, %s40
      %p46 = scmp.eq.s32.totalorder %s15, 0
      %p47 = por %p45, %p46
      %p48 = scmp.ne.s32.totalorder %s37, %s40
      %p49 = scmp.eq.s32.totalorder %s20, 2
      %p50 = por %p48, %p49
      %p51 = scmp.ne.s32.totalorder %s40, %s41
      %p52 = scmp.eq.s32.totalorder %s20, 0
      %p53 = por %p51, %p52
      %p54 = scmp.ne.s32.totalorder %s40, %s41
      %p55 = scmp.eq.s32.totalorder %s21, 2
      %p56 = por %p54, %p55
      %p58 = scmp.ne.s32.totalorder %s41, %s57
      %p59 = scmp.eq.s32.totalorder %s21, 0
      %p60 = por %p58, %p59
      %s61 = ssub.s32 %s23, %s30
      %p62 = scmp.eq.s32.totalorder %s61, 0
      %s64 = sadd.s32 %s63, 1
      %s65 = scalar_select %p62, %s63, %s64
      %p68 = pneg %p62
      %p69 = scmp.eq.s32.totalorder %s15, 2
      %p70 = por %p68, %p69
      %p71 = scmp.ne.s32.totalorder %s63, %s66
      %p72 = scmp.eq.s32.totalorder %s15, 0
      %p73 = por %p71, %p72
      %p74 = scmp.ne.s32.totalorder %s63, %s66
      %p75 = scmp.eq.s32.totalorder %s20, 2
      %p76 = por %p74, %p75
      %p77 = scmp.ne.s32.totalorder %s66, %s67
      %p78 = scmp.eq.s32.totalorder %s20, 0
      %p79 = por %p77, %p78
      %p80 = scmp.ne.s32.totalorder %s66, %s67
      %p81 = scmp.eq.s32.totalorder %s21, 2
      %p82 = por %p80, %p81
      %p84 = scmp.ne.s32.totalorder %s67, %s83
      %p85 = scmp.eq.s32.totalorder %s21, 0
      %p86 = por %p84, %p85
      %s87 = ssub.s32 %s23, %s30
      %p88 = scmp.eq.s32.totalorder %s87, 0
      %s90 = sadd.s32 %s89, 1
      %s91 = scalar_select %p88, %s89, %s90
      %p94 = pneg %p88
      %p95 = scmp.eq.s32.totalorder %s15, 2
      %p96 = por %p94, %p95
      %p97 = scmp.ne.s32.totalorder %s89, %s92
      %p98 = scmp.eq.s32.totalorder %s15, 0
      %p99 = por %p97, %p98
      %p100 = scmp.ne.s32.totalorder %s89, %s92
      %p101 = scmp.eq.s32.totalorder %s20, 2
      %p102 = por %p100, %p101
      %p103 = scmp.ne.s32.totalorder %s92, %s93
      %p104 = scmp.eq.s32.totalorder %s20, 0
      %p105 = por %p103, %p104
      %p106 = scmp.ne.s32.totalorder %s92, %s93
      %p107 = scmp.eq.s32.totalorder %s21, 2
      %p108 = por %p106, %p107
      %p110 = scmp.ne.s32.totalorder %s93, %s109
      %p111 = scmp.eq.s32.totalorder %s21, 0
      %p112 = por %p110, %p111
      %s113 = ssub.s32 %s22, %s34
      %s114 = ssub.s32 %s23, %s30
      %s115 = sor.u32 %s113, %s114
      %p116 = scmp.eq.s32.totalorder %s115, 0
      %s118 = sadd.s32 %s117, 1
      %s119 = scalar_select %p116, %s117, %s118
      %p122 = pneg %p116
      %p123 = scmp.eq.s32.totalorder %s15, 2
      %p124 = por %p122, %p123
      %p125 = scmp.ne.s32.totalorder %s117, %s120
      %p126 = scmp.eq.s32.totalorder %s15, 0
      %p127 = por %p125, %p126
      %p128 = scmp.ne.s32.totalorder %s117, %s120
      %p129 = scmp.eq.s32.totalorder %s20, 2
      %p130 = por %p128, %p129
      %p131 = scmp.ne.s32.totalorder %s120, %s121
      %p132 = scmp.eq.s32.totalorder %s20, 0
      %p133 = por %p131, %p132
      %p134 = scmp.ne.s32.totalorder %s120, %s121
      %p135 = scmp.eq.s32.totalorder %s21, 2
      %p136 = por %p134, %p135
      %p138 = scmp.ne.s32.totalorder %s121, %s137
      %p139 = scmp.eq.s32.totalorder %s21, 0
      %p140 = por %p138, %p139
      %s141 = ssub.s32 %s22, %s34
      %p142 = scmp.eq.s32.totalorder %s141, 0
      %s144 = sadd.s32 %s143, 1
      %s145 = scalar_select %p142, %s143, %s144
      %p148 = pneg %p142
      %p149 = scmp.eq.s32.totalorder %s15, 2
      %p150 = por %p148, %p149
      %p151 = scmp.ne.s32.totalorder %s143, %s146
      %p152 = scmp.eq.s32.totalorder %s15, 0
      %p153 = por %p151, %p152
      %p154 = scmp.ne.s32.totalorder %s143, %s146
      %p155 = scmp.eq.s32.totalorder %s20, 2
      %p156 = por %p154, %p155
      %p157 = scmp.ne.s32.totalorder %s146, %s147
      %p158 = scmp.eq.s32.totalorder %s20, 0
      %p159 = por %p157, %p158
      %p160 = scmp.ne.s32.totalorder %s146, %s147
      %p161 = scmp.eq.s32.totalorder %s21, 2
      %p162 = por %p160, %p161
      %p164 = scmp.ne.s32.totalorder %s147, %s163
      %p165 = scmp.eq.s32.totalorder %s21, 0
      %p166 = por %p164, %p165
      %p167 = scmp.le.s32.totalorder 1, %s15
      %p168 = scmp.lt.s32.totalorder %s15, 4
      %p169 = pnand %p167, %p168
      %p170 = pneg %p169
      // Predicated region
      $region9: #{projection_layer.1} parent=5 // pred_check
        _
      $region10: #{projection_layer.1} parent=5 // pred_check_branch
        %172 = sbr.rel (%p169) target = $region12
      $region11: #{projection_layer.1} parent=5 // pred_region
        %s173 = ssub.s32 %s15, 1
        // Predicated region
        $region13: #{projection_layer.1} parent=11 // pred_check
          %p174 = pneg %p53
        $region14: #{projection_layer.1} parent=11 // pred_check_branch
          %176 = sbr.rel (%p174) target = $region16
        $region15: #{projection_layer.1} parent=11 // pred_region
          %s177 = smul.u32 2, %s24
          %s179 = ssub.s32 256, 256
          %180 = vsyncadd [#allocation5], %s179
          %s181 = smul.addr %s177, 128
          %s182 = scalar_lea.hbm %s0, %s181
          %s183 = sshll.u32 [#allocation4], 4
          %s184 = int_to_ptr.vmem [resolvable:$true] %s183
          %189 = dma.hbm_to_vmem [thread:$0]  %s182, 256, %s184, [#allocation5], 128, 128, 8
        $region16: #{projection_layer.1} parent=11 // pred_fallthru
          _
      $region12: #{projection_layer.1} parent=5 // pred_fallthru
        _
      %p190 = scmp.lt.s32.totalorder %s15, 3
      // Predicated region
      $region17: #{projection_layer.1} parent=5 // pred_check
        %p191 = pneg %p190
      $region18: #{projection_layer.1} parent=5 // pred_check_branch
        %193 = sbr.rel (%p191) target = $region20
      $region19: #{projection_layer.1} parent=5 // pred_region
        // Predicated region
        $region21: #{projection_layer.1} parent=19 // pred_check
          %p194 = pneg %p73
        $region22: #{projection_layer.1} parent=19 // pred_check_branch
          %196 = sbr.rel (%p194) target = $region24
        $region23: #{projection_layer.1} parent=19 // pred_region
          %s197 = sand.u32 %s63, 1
          %s198 = scalar_lea.sflag [#allocation7], %s197
          %s199 = sand.u32 %s63, 1
          %s200 = smul.addr %s199, 64
          %s201 = scalar_lea.vmem [#allocation6], %s200
          %s203 = ssub.s32 1024, 1024
          %204 = vsyncadd %s198, %s203
          %s205 = smul.addr %s23, 128
          %s206 = scalar_lea.hbm %s1, %s205
          %s207 = sshll.u32 %s201, 4
          %s208 = int_to_ptr.vmem [resolvable:$true] %s207
          %213 = dma.hbm_to_vmem [thread:$0]  %s206, 1024, %s208, %s198, 384, 128, 8
        $region24: #{projection_layer.1} parent=19 // pred_fallthru
          _
        // Predicated region
        $region25: #{projection_layer.1} parent=19 // pred_check
          %p214 = pneg %p99
        $region26: #{projection_layer.1} parent=19 // pred_check_branch
          %216 = sbr.rel (%p214) target = $region28
        $region27: #{projection_layer.1} parent=19 // pred_region
          %p217 = scmp.lt.s32.totalorder %s23, 2
          %s218 = scalar_select %p217, %s23, 2
          %s219 = scalar_lea.vmem %s2, %s218
        $region28: #{projection_layer.1} parent=19 // pred_fallthru
          _
      $region20: #{projection_layer.1} parent=5 // pred_fallthru
        _
      %p220 = scmp.le.s32.totalorder 1, %s15
      %p221 = scmp.lt.s32.totalorder %s15, 4
      %p222 = pnand %p220, %p221
      %p223 = pneg %p222
      // Predicated region
      $region29: #{projection_layer.1} parent=5 // pred_check
        _
      $region30: #{projection_layer.1} parent=5 // pred_check_branch
        %225 = sbr.rel (%p222) target = $region32
      $region31: #{projection_layer.1} parent=5 // pred_region
        %s226 = ssub.s32 %s15, 1
        // Predicated region
        $region33: #{projection_layer.1} parent=31 // pred_check
          %p227 = pneg %p53
        $region34: #{projection_layer.1} parent=31 // pred_check_branch
          %229 = sbr.rel (%p227) target = $region36
        $region35: #{projection_layer.1} parent=31 // pred_region
          %230 = dma.done [#allocation5], 256
        $region36: #{projection_layer.1} parent=31 // pred_fallthru
          _
        %s231 = sand.u32 %s66, 1
        %s232 = scalar_lea.sflag [#allocation7], %s231
        %s233 = sand.u32 %s66, 1
        %s234 = smul.addr %s233, 64
        %s235 = scalar_lea.vmem [#allocation6], %s234
        // Predicated region
        $region37: #{projection_layer.1} parent=31 // pred_check
          %p236 = pneg %p79
        $region38: #{projection_layer.1} parent=31 // pred_check_branch
          %238 = sbr.rel (%p236) target = $region40
        $region39: #{projection_layer.1} parent=31 // pred_region
          %239 = dma.done %s232, 1024
        $region40: #{projection_layer.1} parent=31 // pred_fallthru
          _
        %p240 = pneg %p53
        %p241 = pneg %p50
        %s242 = sand.u32 %s66, 1
        %s243 = scalar_lea.sflag [#allocation7], %s242
        %s244 = sand.u32 %s66, 1
        %s245 = smul.addr %s244, 64
        %s246 = scalar_lea.vmem [#allocation6], %s245
        %p247 = pneg %p79
        %p248 = pneg %p76
        %p249 = scmp.lt.s32.totalorder %s25, 2
        %s250 = scalar_select %p249, %s25, 2
        %s251 = scalar_lea.vmem %s2, %s250
        %p252 = pneg %p105
        %p253 = pneg %p102
        %p254 = pneg %p133
        %p255 = pneg %p130
        %s256 = sand.u32 %s120, 1
        %s257 = sand.u32 %s120, 1
        %s258 = smul.addr %s257, 16
        %s259 = scalar_lea.vmem [#allocation8], %s258
        %p260 = pneg %p159
        %p261 = pneg %p156
        %s262 = smul.u32 2, %s24
        %p263 = scmp.lt.s32.totalorder %s262, 1
        %s264 = scalar_select %p263, %s262, 1
        %s265 = smul.addr %s264, 8
        %s266 = scalar_lea.vmem %s4, %s265
        %s267 = smul.u32 2, %s24
        %p268 = scmp.lt.s32.totalorder %s25, 2
        %s269 = scalar_select %p268, %s25, 2
        %s270 = scalar_lea.vmem %s2, %s269
        %s271 = smul.u32 2, %s24
        %s272 = smul.u32 2, %s24
        %p273 = scmp.lt.s32.totalorder %s272, 1
        %s274 = scalar_select %p273, %s272, 1
        %s275 = smul.addr %s274, 8
        %s276 = scalar_lea.vmem %s4, %s275
        %s277 = smul.u32 2, %s24
        %p278 = scmp.eq.s32.totalorder %s25, 0
        // Predicated region
        $region41: #{projection_layer.1} parent=31 // pred_check
          %p279 = pneg %p278
        $region42: #{projection_layer.1} parent=31 // pred_check_branch
          %281 = sbr.rel (%p279) target = $region44
        $region43: #{projection_layer.1} parent=31 // pred_region
          %vm282 = vcmask 7168
          %283 = vst.msk [vmem:[#allocation2] sm:$0xff] %vm282, -inf
          %284 = vst.msk [vmem:[#allocation2 + $0x8] sm:$0xff] %vm282, -inf
          %285 = vst.msk [vmem:[#allocation3] sm:$0xff] %vm282, 0.0
          %286 = vst.msk [vmem:[#allocation3 + $0x8] sm:$0xff] %vm282, 0.0
        $region44: #{projection_layer.1} parent=31 // pred_fallthru
          _
        %v287 = vld [vmem:[#allocation4] sm:$0xff]
        %v288 = vld [vmem:[#allocation4 + $0x8] sm:$0xff]
        %v289 = vld [vmem:[%s235] sm:$0xff]
        %v290 = vld [vmem:[%s235 + $0x8] sm:$0xff]
        %v291 = vld [vmem:[%s235 + $0x10] sm:$0xff]
        %v292 = vld [vmem:[%s235 + $0x18] sm:$0xff]
        %v293 = vld [vmem:[%s235 + $0x20] sm:$0xff]
        %v294 = vld [vmem:[%s235 + $0x28] sm:$0xff]
        %v295 = vld [vmem:[%s235 + $0x30] sm:$0xff]
        %v296 = vld [vmem:[%s235 + $0x38] sm:$0xff]
        %v297 = vld [vmem:[%s270] sm:$0x1]
        %v299 = vlaneseq
        %v300 = vshrl.u32 %v299, 7
        %v301 = vsub.s32 0, %v300
        %v302 = vrot.slane %v297, %v301
        %vm304 = vcmask 523264
        %v306 = vsel %vm304, %v287, 0
        %v309 = vsel %vm304, %v288, 0
        %311 = vmatprep.subr.mxu0 0.0
        %312 = vmatpush1.msra.mxu0 0.0
        %313 = vmatprep.subr.mxu0 0.0
        %314 = vmatpush1.msra.mxu0 0.0
        %315 = vmatprep.subr.mxu0 0.0
        %316 = vmatpush1.msra.mxu0 0.0
        %317 = vmatprep.subr.mxu0 0.0
        %318 = vmatpush1.msra.mxu0 0.0
        %319 = vmatprep.subr.mxu0 0.0
        %320 = vmatpush1.msra.mxu0 0.0
        %321 = vmatprep.subr.mxu0 0.0
        %322 = vmatpush1.msra.mxu0 0.0
        %323 = vmatprep.subr.mxu0 0.0
        %324 = vmatpush1.msra.mxu0 0.0
        %325 = vmatprep.subr.mxu0 0.0
        %326 = vmatpush1.msra.mxu0 0.0
        %327 = vmatprep.subr.mxu0 0.0
        %328 = vmatpush1.msra.mxu0 %v296
        %329 = vmatprep.subr.mxu0 0.0
        %330 = vmatpush1.msra.mxu0 %v295
        %331 = vmatprep.subr.mxu0 0.0
        %332 = vmatpush1.msra.mxu0 %v294
        %333 = vmatprep.subr.mxu0 0.0
        %334 = vmatpush1.msra.mxu0 %v293
        %335 = vmatprep.subr.mxu0 0.0
        %336 = vmatpush1.msra.mxu0 %v292
        %337 = vmatprep.subr.mxu0 0.0
        %338 = vmatpush1.msra.mxu0 %v291
        %339 = vmatprep.subr.mxu0 0.0
        %340 = vmatpush1.msra.mxu0 %v290
        %341 = vmatprep.subr.mxu0 0.0
        %342 = vmatpush1.msra.mxu0 %v289
        %343 = vmatprep.subr.mxu0 0.0
        %344 = vmatpush2.msra.mxu0 0.0
        %345 = vmatprep.subr.mxu0 0.0
        %346 = vmatpush2.msra.mxu0 0.0
        %347 = vmatprep.subr.mxu0 0.0
        %348 = vmatpush2.msra.mxu0 0.0
        %349 = vmatprep.subr.mxu0 0.0
        %350 = vmatpush2.msra.mxu0 0.0
        %351 = vmatprep.subr.mxu0 0.0
        %352 = vmatpush2.msra.mxu0 0.0
        %353 = vmatprep.subr.mxu0 0.0
        %354 = vmatpush2.msra.mxu0 0.0
        %355 = vmatprep.subr.mxu0 0.0
        %356 = vmatpush2.msra.mxu0 0.0
        %357 = vmatprep.subr.mxu0 0.0
        %358 = vmatpush2.msra.mxu0 0.0
        %359 = vmatprep.subr.mxu0 0.0
        %360 = vmatpush2.msra.mxu0 0.0
        %361 = vmatprep.subr.mxu0 0.0
        %362 = vmatpush2.msra.mxu0 0.0
        %363 = vmatprep.subr.mxu0 0.0
        %364 = vmatpush2.msra.mxu0 0.0
        %365 = vmatprep.subr.mxu0 0.0
        %366 = vmatpush2.msra.mxu0 0.0
        %367 = vmatprep.subr.mxu0 0.0
        %368 = vmatpush2.msra.mxu0 0.0
        %369 = vmatprep.subr.mxu0 0.0
        %370 = vmatpush2.msra.mxu0 0.0
        %371 = vmatprep.subr.mxu0 0.0
        %372 = vmatpush2.msra.mxu0 0.0
        %373 = vmatprep.subr.mxu0 0.0
        %374 = vmatpush2.msra.mxu0 0.0
        %375 = vmatprep.mubr.f32.mxu0 0.0
        %376 = vmatmul.mubr.f32.gmra.mxu0 %v306
        %v377 = vpop.f32.mrf.mxu0
        %v378 = vadd.f32 %v302, %v377
        %v379 = vpop.f32.mrf.mxu0
        %380 = vmatprep.mubr.f32.mxu0 0.0
        %381 = vmatmul.mubr.f32.gmra.mxu0 %v309
        %v382 = vpop.f32.mrf.mxu0
        %v383 = vadd.f32 %v302, %v382
        %v384 = vpop.f32.mrf.mxu0
        %385 = vdwg.mxu0
        %v386 = vlaneseq
        %v387 = vand.u32 %v386, 127
        %s388 = smul.u32 %s25, 128
        %v389 = vstv %s388
        %v390 = vadd.s32 %v387, %v389
        %vm391 = vcmp.lt.s32.totalorder %v390, 320
        %v392 = vsel %vm391, %v378, -1e+30
        %v393 = vsel %vm391, %v383, -1e+30
        %394 = vst [vmem:[%s259] sm:$0xff] %v392
        %395 = vst [vmem:[%s259 + $0x8] sm:$0xff] %v393
        %v396 = vld [vmem:[#allocation2] sm:$0xff]
        %v397 = vld [vmem:[#allocation2 + $0x8] sm:$0xff]
        %398 = vmax.xlane.f32.xlu0 %v392
        %v399 = vpop.xlane.xlu0 %398
        %400 = vmax.xlane.f32.xlu0 %v393
        %v401 = vpop.xlane.xlu0 %400
        %v402 = vmax.f32 %v396, %v399
        %v403 = vmax.f32 %v397, %v401
        %v404 = vld [vmem:[#allocation3] sm:$0xff]
        %v405 = vld [vmem:[#allocation3 + $0x8] sm:$0xff]
        %v406 = vsub.f32 %v396, %v402
        %v407 = vsub.f32 %v397, %v403
        %v408 = vmul.f32 %v406, 1.442695
        %v409 = vpow.pop %v408
        %v410 = vmul.f32 %v407, 1.442695
        %v411 = vpow.pop %v410
        %v412 = vmul.f32 %v404, %v409
        %v413 = vmul.f32 %v405, %v411
        %415 = vset.pattern.permute.xlu0 0
        %416 = vperm.xlu0 %415, %v402
        %v417 = vpop.permute.xlu0 %416
        %420 = vset.pattern.permute.xlu0 0
        %421 = vperm.xlu0 %420, %v403
        %v422 = vpop.permute.xlu0 %421
        %v424 = vsub.f32 %v392, %v417
        %v425 = vsub.f32 %v393, %v422
        %v426 = vmul.f32 %v424, 1.442695
        %v427 = vpow.pop %v426
        %v428 = vmul.f32 %v425, 1.442695
        %v429 = vpow.pop %v428
        %430 = vadd.xlane.f32.xlu0 %v427
        %v431 = vpop.xlane.xlu0 %430
        %432 = vadd.xlane.f32.xlu0 %v429
        %v433 = vpop.xlane.xlu0 %432
        %v434 = vadd.f32 %v412, %v431
        %v435 = vadd.f32 %v413, %v433
        %vm436 = vcmask 7168
        %437 = vst.msk [vmem:[#allocation3] sm:$0xff] %vm436, %v434
        %438 = vst.msk [vmem:[#allocation3 + $0x8] sm:$0xff] %vm436, %v435
        %439 = vst.msk [vmem:[#allocation2] sm:$0xff] %vm436, %v402
        %440 = vst.msk [vmem:[#allocation2 + $0x8] sm:$0xff] %vm436, %v403
        %p441 = scmp.eq.s32.totalorder %s25, 2
        // Predicated region
        $region45: #{projection_layer.1} parent=31 // pred_check
          %p442 = pneg %p441
        $region46: #{projection_layer.1} parent=31 // pred_check_branch
          %444 = sbr.rel (%p442) target = $region48
        $region47: #{projection_layer.1} parent=31 // pred_region
          %v445 = vld [vmem:[#allocation2] sm:$0xff]
          %v446 = vld [vmem:[#allocation2 + $0x8] sm:$0xff]
          %v447 = vld [vmem:[#allocation3] sm:$0xff]
          %v448 = vld [vmem:[#allocation3 + $0x8] sm:$0xff]
          %v449 = vlog2.pop %v447
          %v450 = vmul.f32 %v449, 0.6931472
          %v451 = vlog2.pop %v448
          %v452 = vmul.f32 %v451, 0.6931472
          %v453 = vadd.f32 %v445, %v450
          %v454 = vadd.f32 %v446, %v452
          %455 = vst.msk [vmem:[%s276] sm:$0xff] %vm436, %v453
          %456 = vst.msk [vmem:[%s276 + $0x8] sm:$0xff] %vm436, %v454
        $region48: #{projection_layer.1} parent=31 // pred_fallthru
          _
        %s457 = sand.u32 %s120, 1
        %s458 = sand.u32 %s120, 1
        %s459 = smul.addr %s458, 16
        %s460 = scalar_lea.vmem [#allocation8], %s459
        %s461 = smul.u32 2, %s24
        %p462 = scmp.lt.s32.totalorder %s461, 1
        %s463 = scalar_select %p462, %s461, 1
        %s464 = smul.addr %s463, 8
        %s465 = scalar_lea.vmem %s4, %s464
        // Predicated region
        $region49: #{projection_layer.1} parent=31 // pred_check
          %p466 = pneg %p130
        $region50: #{projection_layer.1} parent=31 // pred_check_branch
          %468 = sbr.rel (%p466) target = $region52
        $region51: #{projection_layer.1} parent=31 // pred_region
          %s469 = smul.u32 2, %s24
          %s470 = smul.addr %s469, 3
          %s471 = sadd.s32 %s25, %s470
          %s472 = smul.addr %s471, 8
          %s473 = scalar_lea.vmem %s3, %s472
          // Predicated region
          $region53: #{projection_layer.1} parent=51 // pred_check
            _
          $region54: #{projection_layer.1} parent=51 // pred_check_branch
            %475 = sbr.rel (0) target = $region56
          $region55: #{projection_layer.1} parent=51 // pred_region
            // Predicated region
            $region57: #{projection_layer.1} parent=55 // pred_check
              _
            $region58: #{projection_layer.1} parent=55 // pred_check_branch
              %477 = sbr.rel (0) target = $region60
            $region59: #{projection_layer.1} parent=55 // pred_region
              // Predicated region
              $region72: #{projection_layer.1} parent=59 // pred_check
                _
              $region73: #{projection_layer.1} parent=59 // pred_check_branch
                %495 = sbr.rel (0) target = $region75
              $region74: #{projection_layer.1} parent=59 // pred_region
                loop: start=0, step=1, limit=1
                $region76: #{projection_layer.1} parent=74 // loop_pre_header
                  _
                $region77: #{projection_layer.1} parent=74 // loop_header
                  %s497 = sphi 0, %s501
                  %p498 = scmp.ge.s32.totalorder %s497, 1
                  %s502 = sphi %s460, %s460
                  %s503 = sphi %s473, %s473
                $region78: #{projection_layer.1} parent=74 // loop_header_branch
                  %500 = sbr.rel (%p498) target = $region82
                $region79: #{projection_layer.1} parent=74 // loop_body
                  %v504 = vld [vmem:[%s502] sm:$0xff]
                  %505 = vst [vmem:[%s503] sm:$0xff] %v504
                  %v506 = vld [vmem:[%s502 + $0x8] sm:$0xff]
                  %507 = vst [vmem:[%s503 + $0x18] sm:$0xff] %v506
                $region80: #{projection_layer.1} parent=74 // loop_footer
                  %s501 = sadd.s32 1, %s497
                $region81: #{projection_layer.1} parent=74 // loop_footer_branch
                  %496 = sbr.rel target = $region77
                $region82: #{projection_layer.1} parent=74 // loop_exit
                  _
              $region75: #{projection_layer.1} parent=59 // pred_fallthru
                _
              // Predicated region
              $region83: #{projection_layer.1} parent=59 // pred_check
                _
              $region84: #{projection_layer.1} parent=59 // pred_check_branch
                %509 = sbr.rel target = $region86
              $region85: #{projection_layer.1} parent=59 // pred_region
                _
              $region86: #{projection_layer.1} parent=59 // pred_fallthru
                _
            $region60: #{projection_layer.1} parent=55 // pred_fallthru
              _
            // Predicated region
            $region61: #{projection_layer.1} parent=55 // pred_check
              _
            $region62: #{projection_layer.1} parent=55 // pred_check_branch
              %479 = sbr.rel target = $region64
            $region63: #{projection_layer.1} parent=55 // pred_region
              %s481 = ssub.s32 256, 1
              loop: start=0, step=1, limit=1
              $region65: #{projection_layer.1} parent=63 // loop_pre_header
                _
              $region66: #{projection_layer.1} parent=63 // loop_header
                %s483 = sphi 0, %s487
                %p484 = scmp.ge.s32.totalorder %s483, 1
                %s488 = sphi %s460, %s460
                %s489 = sphi %s473, %s473
              $region67: #{projection_layer.1} parent=63 // loop_header_branch
                %486 = sbr.rel (%p484) target = $region71
              $region68: #{projection_layer.1} parent=63 // loop_body
                %v490 = vld [vmem:[%s488] sm:%s481]
                %491 = vst [vmem:[%s489] sm:%s481] %v490
                %v492 = vld [vmem:[%s488 + $0x8] sm:%s481]
                %493 = vst [vmem:[%s489 + $0x18] sm:%s481] %v492
              $region69: #{projection_layer.1} parent=63 // loop_footer
                %s487 = sadd.s32 1, %s483
              $region70: #{projection_layer.1} parent=63 // loop_footer_branch
                %482 = sbr.rel target = $region66
              $region71: #{projection_layer.1} parent=63 // loop_exit
                _
            $region64: #{projection_layer.1} parent=55 // pred_fallthru
              _
          $region56: #{projection_layer.1} parent=51 // pred_fallthru
            _
          %510 = vnop
        $region52: #{projection_layer.1} parent=31 // pred_fallthru
          _
        // Predicated region
        $region87: #{projection_layer.1} parent=31 // pred_check
          %p511 = pneg %p156
        $region88: #{projection_layer.1} parent=31 // pred_check_branch
          %513 = sbr.rel (%p511) target = $region90
        $region89: #{projection_layer.1} parent=31 // pred_region
          %s514 = smul.u32 2, %s24
        $region90: #{projection_layer.1} parent=31 // pred_fallthru
          _
        // Predicated region
        $region91: #{projection_layer.1} parent=31 // pred_check
          %p515 = pneg %p156
        $region92: #{projection_layer.1} parent=31 // pred_check_branch
          %517 = sbr.rel (%p515) target = $region94
        $region93: #{projection_layer.1} parent=31 // pred_region
          %s518 = smul.u32 2, %s24
          %p519 = scmp.lt.s32.totalorder %s518, 1
          %s520 = scalar_select %p519, %s518, 1
          %s521 = smul.addr %s520, 8
          %s522 = scalar_lea.vmem %s4, %s521
        $region94: #{projection_layer.1} parent=31 // pred_fallthru
          _
      $region32: #{projection_layer.1} parent=5 // pred_fallthru
        _
      %p523 = scmp.le.s32.totalorder 2, %s15
      // Predicated region
      $region95: #{projection_layer.1} parent=5 // pred_check
        %p524 = pneg %p523
      $region96: #{projection_layer.1} parent=5 // pred_check_branch
        %526 = sbr.rel (%p524) target = $region98
      $region97: #{projection_layer.1} parent=5 // pred_region
        %s527 = ssub.s32 %s15, 2
        // Predicated region
        $region99: #{projection_layer.1} parent=97 // pred_check
          %p528 = pneg %p136
        $region100: #{projection_layer.1} parent=97 // pred_check_branch
          %530 = sbr.rel (%p528) target = $region102
        $region101: #{projection_layer.1} parent=97 // pred_region
          %s531 = sand.u32 %s121, 1
          %s532 = sand.u32 %s121, 1
          %s533 = smul.addr %s532, 16
          %s534 = scalar_lea.vmem [#allocation8], %s533
        $region102: #{projection_layer.1} parent=97 // pred_fallthru
          _
      $region98: #{projection_layer.1} parent=5 // pred_fallthru
        _
    $region6: #{projection_layer.1} parent=1 // loop_footer
      %s19 = sadd.s32 1, %s15
    $region7: #{projection_layer.1} parent=1 // loop_footer_branch
      %14 = sbr.rel target = $region3
    $region8: #{projection_layer.1} parent=1 // loop_exit
      _
    %535 = vsyncpa [#allocation5], 1
    %s536 = scalar_lea.sflag [#allocation5], 1
    %537 = vsyncpa %s536, 1
    %538 = vsyncpa [#allocation7], 1
    %s539 = scalar_lea.sflag [#allocation7], 1
    %540 = vsyncpa %s539, 1

</llo_original>
